<compile_context>
chip_gen: v7x
topology: tpu7x:2x2x1
jax: 0.10.0
libtpu: 0.0.40
codegen_flags: <defaults>
</compile_context>

<pallas_src>
import jax
import jax.numpy as jnp
from jax import lax
from jax.experimental import pallas as pl
from jax.experimental.pallas import tpu as pltpu


# ----------------------------- kernels --------------------------------------

def _lam_fused_kernel(gamma_ref, x_ref, o_ref):
    """Single-pass: energy -> softmax(rowmax - E) -> gamma*attn@x + x."""
    tb = x_ref.shape[0]
    for b in range(tb):                                   # static, tb is small
        xb = x_ref[b]                                     # (N, M)
        # E = X @ X^T (contract the lane dim of both operands).
        energy = lax.dot_general(
            xb, xb, (((1,), (1,)), ((), ())),
            preferred_element_type=jnp.float32)           # (N, N) f32
        # softmax(rowmax(E) - E) == exp(rowmin(E) - E) / sum  (single reduce).
        e_min = jnp.min(energy, axis=-1, keepdims=True)
        p = jnp.exp(e_min - energy)
        attn = p / jnp.sum(p, axis=-1, keepdims=True)     # exact divide
        a = (gamma_ref[0] * attn).astype(xb.dtype)        # gamma folded
        out = lax.dot_general(
            a, xb, (((1,), (0,)), ((), ())),
            preferred_element_type=jnp.float32)           # (N, M) f32
        o_ref[b] = (out + xb.astype(jnp.float32)).astype(o_ref.dtype)


def _lam_energy_kernel(gamma_ref, x_ref, attn_ref):
    """Pass 1: accumulate energy over M tiles directly into the resident
    output block; finalize gamma * softmax(rowmax - E) on the last tile."""
    mt = pl.program_id(1)

    @pl.when(mt == 0)
    def _init():
        attn_ref[...] = jnp.zeros_like(attn_ref)

    tb = x_ref.shape[0]
    for b in range(tb):
        xb = x_ref[b]                                     # (N, TM)
        attn_ref[b] += lax.dot_general(
            xb, xb, (((1,), (1,)), ((), ())),
            preferred_element_type=jnp.float32)           # (N, N) f32

    @pl.when(mt == pl.num_programs(1) - 1)
    def _finalize():
        energy = attn_ref[...]                            # (TB, N, N) f32
        e_min = jnp.min(energy, axis=-1, keepdims=True)
        p = jnp.exp(e_min - energy)
        attn = p / jnp.sum(p, axis=-1, keepdims=True)
        attn_ref[...] = gamma_ref[0] * attn               # gamma folded here


def _lam_out_kernel(attn_ref, x_ref, o_ref):
    """Pass 2: out_chunk = (gamma*attn) @ x_chunk + x_chunk (lane-dense)."""
    tb = x_ref.shape[0]
    for b in range(tb):
        xb = x_ref[b]                                     # (N, TM)
        ab = attn_ref[b].astype(xb.dtype)                 # (N, N)
        out = lax.dot_general(
            ab, xb, (((1,), (0,)), ((), ())),
            preferred_element_type=jnp.float32)           # (N, TM) f32
        o_ref[b] = (out + xb.astype(jnp.float32)).astype(o_ref.dtype)


# ----------------------------- wrapper ---------------------------------------

_MIB = 1024 * 1024


def _round_up(a, b):
    return (a + b - 1) // b * b


def _largest_dividing_tile(m, cap):
    """Largest multiple of 128 that divides m and is <= cap (m % 128 == 0)."""
    t = min(m, cap) // 128 * 128
    while t > 128 and m % t != 0:
        t -= 128
    return t


def lam_module_forward(x, gamma, *, stream_dtype=None, force_two_pass=False):
    """x: (B, N, C, H, W), gamma: (1,) -> (B, N*C, H, W) (matches PyTorch)."""
    B, N, C, H, W = x.shape
    M = C * H * W
    out_dtype = x.dtype
    if stream_dtype is not None:
        # Optional bandwidth saver (kernel is HBM-bound).  NOTE: this rounds
        # both the energy inputs and the residual path to stream_dtype; since
        # energies have magnitude ~M, attention weights are visibly perturbed.
        x = x.astype(stream_dtype)
    dt = x.dtype
    esize = jnp.dtype(dt).itemsize
    out_esize = jnp.dtype(out_dtype).itemsize

    try:
        vmem_cap = int(pltpu.get_tpu_info().vmem_capacity_bytes)
    except Exception:
        vmem_cap = 64 * _MIB
    # Stay below physical VMEM with headroom (v7x: 64 MiB per TC).
    vmem_ceiling = max(vmem_cap - 16 * _MIB, 32 * _MIB)

    def _limit(estimate):
        return int(min(max(estimate, 16 * _MIB), vmem_ceiling))

    gamma_f32 = jnp.asarray(gamma, jnp.float32).reshape(1)
    x_flat = x.reshape(B, N, M)
    attn_bytes = N * N * 4

    # ---- fused single-pass path (small per-image slabs) --------------------
    fused_est = (2 * N * M * esize            # x block, double-buffered
                 + 2 * N * M * out_esize      # out block, double-buffered
                 + 2 * N * M * 4              # f32 matmul result + cast copy
                 + 2 * attn_bytes + 2 * _MIB)
    if not force_two_pass and fused_est <= min(vmem_ceiling, 40 * _MIB):
        out_flat = pl.pallas_call(
            _lam_fused_kernel,
            out_shape=jax.ShapeDtypeStruct((B, N, M), out_dtype),
            grid_spec=pltpu.PrefetchScalarGridSpec(
                num_scalar_prefetch=0,
                grid=(B,),
                in_specs=[
                    pl.BlockSpec(memory_space=pltpu.MemorySpace.SMEM),  # gamma
                    pl.BlockSpec((1, N, M), lambda b: (b, 0, 0)),
                ],
                out_specs=pl.BlockSpec((1, N, M), lambda b: (b, 0, 0)),
            ),
            compiler_params=pltpu.CompilerParams(
                dimension_semantics=("parallel",),
                vmem_limit_bytes=_limit(fused_est),
            ),
            cost_estimate=pl.CostEstimate(
                flops=int(4 * B * N * N * M + B * N * M),
                transcendentals=int(B * N * N),
                bytes_accessed=int(B * N * M * (esize + out_esize)),
            ),
        )(gamma_f32, x_flat)
        return out_flat.reshape(B, N * C, H, W)

    # ---- two-pass streaming path --------------------------------------------
    # Chunk-buffer target: ~1/16 of physical VMEM (v7x 4 MiB, v5e/v6e 8 MiB).
    x_buf_target = max(512 * 1024, min(vmem_cap // 16, 8 * _MIB))
    tm_cap = max(128, (x_buf_target // (N * max(esize, out_esize))) // 128 * 128)

    if M % 128 == 0:
        TM = _largest_dividing_tile(M, tm_cap)            # divides M: no pad
        M_pad = M
    elif N * M * max(esize, out_esize) <= 2 * x_buf_target:
        TM = M                                            # full-M block, no pad
        M_pad = M
    else:
        # Rare fallback (large M not a multiple of 128): pad to 128 and slice.
        M_pad = _round_up(M, 128)
        TM = _largest_dividing_tile(M_pad, tm_cap)
    MT = M_pad // TM

    if M_pad != M:
        x_flat = jnp.pad(x_flat, ((0, 0), (0, 0), (0, M_pad - M)))

    # Pack batch elements per grid step when chunks are small; keep >= 2 batch
    # grid steps when B >= 2 so pass 1 (only "parallel" axis = batch) still
    # covers both TensorCores on v7x.
    TB = 1
    tb_max = min(B, 8)
    if B >= 2:
        tb_max = min(tb_max, B // 2)
    for tb in range(tb_max, 0, -1):
        if B % tb == 0 and tb * N * TM * esize <= x_buf_target:
            TB = tb
            break
    GB = B // TB

    x_block = TB * N * TM * esize
    out_block = TB * N * TM * out_esize
    f32_block = TB * N * TM * 4
    attn_block = TB * attn_bytes

    # ---- Pass 1: energy accumulation + gamma-scaled softmax ----------------
    pass1_est = 2 * x_block + f32_block + 2 * attn_block + 2 * _MIB
    attn_scaled = pl.pallas_call(
        _lam_energy_kernel,
        out_shape=jax.ShapeDtypeStruct((B, N, N), jnp.float32),
        grid_spec=pltpu.PrefetchScalarGridSpec(
            num_scalar_prefetch=0,
            grid=(GB, MT),
            in_specs=[
                pl.BlockSpec(memory_space=pltpu.MemorySpace.SMEM),     # gamma
                pl.BlockSpec((TB, N, TM), lambda b, m: (b, 0, m)),     # x chunk
            ],
            out_specs=pl.BlockSpec((TB, N, N), lambda b, m: (b, 0, 0)),
        ),
        compiler_params=pltpu.CompilerParams(
            dimension_semantics=("parallel", "arbitrary"),
            vmem_limit_bytes=_limit(pass1_est),
        ),
        cost_estimate=pl.CostEstimate(
            flops=int(2 * B * N * N * M_pad),
            transcendentals=int(B * N * N),
            bytes_accessed=int(B * N * M_pad * esize + B * N * N * 4),
        ),
    )(gamma_f32, x_flat)

    # ---- Pass 2: out = (gamma*attn) @ x + x, streamed over M tiles ---------
    pass2_est = (2 * x_block + 2 * out_block + 2 * f32_block
                 + 2 * attn_block + 2 * _MIB)
    out_flat = pl.pallas_call(
        _lam_out_kernel,
        out_shape=jax.ShapeDtypeStruct((B, N, M_pad), out_dtype),
        grid_spec=pltpu.PrefetchScalarGridSpec(
            num_scalar_prefetch=0,
            grid=(GB, MT),
            in_specs=[
                pl.BlockSpec((TB, N, N), lambda b, m: (b, 0, 0)),      # attn
                pl.BlockSpec((TB, N, TM), lambda b, m: (b, 0, m)),     # x chunk
            ],
            out_specs=pl.BlockSpec((TB, N, TM), lambda b, m: (b, 0, m)),
        ),
        compiler_params=pltpu.CompilerParams(
            dimension_semantics=("parallel", "parallel"),
            vmem_limit_bytes=_limit(pass2_est),
        ),
        cost_estimate=pl.CostEstimate(
            flops=int(2 * B * N * N * M_pad + B * N * M_pad),
            transcendentals=0,
            bytes_accessed=int(B * N * M_pad * (esize + out_esize)
                               + B * N * N * 4),
        ),
    )(attn_scaled, x_flat)

    if M_pad != M:
        out_flat = out_flat[:, :, :M]
    return out_flat.reshape(B, N * C, H, W)


# ----------------------------- reference -------------------------------------

def lam_module_reference(x, gamma):
    """Pure-JAX f32 reference mirroring the PyTorch forward."""
    B, N, C, H, W = x.shape
    xf = x.reshape(B, N, -1).astype(jnp.float32)
    energy = jnp.einsum("bnm,bkm->bnk", xf, xf, precision="highest")
    energy_new = jnp.max(energy, axis=-1, keepdims=True) - energy
    attn = jax.nn.softmax(energy_new, axis=-1)
    out = jnp.einsum("bnk,bkm->bnm", attn, xf, precision="highest")
    out = jnp.asarray(gamma, jnp.float32)[0] * out + xf
    return out.reshape(B, N * C, H, W)


if __name__ == "__main__":
    key = jax.random.PRNGKey(0)
    B, N, C, H, W = 2, 8, 4, 16, 16
    x = jax.random.normal(key, (B, N, C, H, W), dtype=jnp.float32)
    # nn.Parameter(torch.zeros(1)) starts at 0; use a non-zero value so the
    # attention path is actually exercised.
    gamma = jnp.array([0.5], dtype=jnp.float32)

    ref = lam_module_reference(x, gamma)
    scale = float(jnp.max(jnp.abs(ref)))
    # Energies have magnitude ~M=C*H*W, so f32 rounding differences between
    # implementations amplify through exp(); check relative to output scale.
    tol = 2e-3 * max(scale, 1.0)

    # 1) fused single-kernel path (selected automatically for small slabs).
    out_fused = lam_module_forward(x, gamma)
    jax.block_until_ready(out_fused)
    assert out_fused.shape == (B, N * C, H, W), out_fused.shape
    err1 = float(jnp.max(jnp.abs(out_fused.astype(jnp.float32) - ref)))
    assert err1 <= tol, (err1, tol)

    # 2) two-pass streaming path (same math; exercised explicitly).
    out_2p = lam_module_forward(x, gamma, force_two_pass=True)
    jax.block_until_ready(out_2p)
    assert out_2p.shape == (B, N * C, H, W), out_2p.shape
    err2 = float(jnp.max(jnp.abs(out_2p.astype(jnp.float32) - ref)))
    assert err2 <= tol, (err2, tol)

    # 3) optional bf16 streaming (HBM-bandwidth saver); compared against a
    #    reference computed on the same bf16-rounded input.
    out_bf = lam_module_forward(x, gamma, stream_dtype=jnp.bfloat16)
    jax.block_until_ready(out_bf)
    ref_bf = lam_module_reference(
        x.astype(jnp.bfloat16).astype(jnp.float32).reshape(B, N, C, H, W), gamma)
    err3 = float(jnp.max(jnp.abs(out_bf.astype(jnp.float32) - ref_bf)))
    assert err3 <= 3e-2 * max(scale, 1.0), err3

    print("KERNEL_OK")
</pallas_src>

<mosaic_0001>
module attributes {stable_mosaic.version = 11 : i64} {
  func.func @_lam_fused_kernel(%arg0: i32, %arg1: memref<1xf32, #tpu.memory_space<smem>>, %arg2: memref<1x8x1024xf32, #tpu.memory_space<vmem>>, %arg3: memref<1x8x1024xf32, #tpu.memory_space<vmem>>) attributes {dimension_semantics = [#tpu.dimension_semantics<parallel>], iteration_bounds = array<i64: 2>, scalar_prefetch = 0 : i64, scratch_operands = 0 : i64, tpu.core_type = #tpu.core_type<tc>, window_params = [{transform_indices = @transform_0, window_bounds = array<i64: 1>}, {transform_indices = @transform_1, window_bounds = array<i64: 1, 8, 1024>}, {transform_indices = @transform_2, window_bounds = array<i64: 1, 8, 1024>}]} {
    %c0 = arith.constant 0 : index
    %c0_0 = arith.constant 0 : index
    %c0_1 = arith.constant 0 : index
    %0 = vector.load %arg2[%c0, %c0_0, %c0_1] : memref<1x8x1024xf32, #tpu.memory_space<vmem>>, vector<1x8x1024xf32>
    %1 = vector.shape_cast %0 : vector<1x8x1024xf32> to vector<8x1024xf32>
    %cst = arith.constant dense<0.000000e+00> : vector<8x8xf32>
    %2 = tpu.matmul %1, %1, %cst {dimension_numbers = #tpu.dot_dimension_numbers<[1], [1], [0], [0], [0, 0, 1, 0], [], []>} : vector<8x1024xf32>, vector<8x1024xf32>, vector<8x8xf32> -> vector<8x8xf32>
    %cst_2 = arith.constant dense<0x7F800000> : vector<8xf32>
    %3 = vector.multi_reduction <minimumf>, %2, %cst_2 [1] : vector<8x8xf32> to vector<8xf32>
    %4 = vector.shape_cast %3 : vector<8xf32> to vector<8x1xf32>
    %5 = vector.broadcast %4 : vector<8x1xf32> to vector<8x8xf32>
    %6 = arith.subf %5, %2 : vector<8x8xf32>
    %7 = math.exp %6 : vector<8x8xf32>
    %cst_3 = arith.constant dense<0.000000e+00> : vector<8xf32>
    %8 = vector.multi_reduction <add>, %7, %cst_3 [1] : vector<8x8xf32> to vector<8xf32>
    %9 = vector.shape_cast %8 : vector<8xf32> to vector<8x1xf32>
    %10 = vector.broadcast %9 : vector<8x1xf32> to vector<8x8xf32>
    %11 = arith.divf %7, %10 : vector<8x8xf32>
    %c0_4 = arith.constant 0 : index
    %12 = memref.load %arg1[%c0_4] : memref<1xf32, #tpu.memory_space<smem>>
    %13 = vector.broadcast %12 : f32 to vector<8x8xf32>
    %14 = arith.mulf %13, %11 : vector<8x8xf32>
    %cst_5 = arith.constant dense<0.000000e+00> : vector<8x1024xf32>
    %15 = tpu.matmul %14, %1, %cst_5 {dimension_numbers = #tpu.dot_dimension_numbers<[1], [0], [0], [1], [0, 0, 1, 1], [], []>} : vector<8x8xf32>, vector<8x1024xf32>, vector<8x1024xf32> -> vector<8x1024xf32>
    %16 = arith.addf %15, %1 : vector<8x1024xf32>
    %c0_6 = arith.constant 0 : index
    %c0_7 = arith.constant 0 : index
    %c0_8 = arith.constant 0 : index
    %17 = vector.load %arg3[%c0_6, %c0_7, %c0_8] : memref<1x8x1024xf32, #tpu.memory_space<vmem>>, vector<1x8x1024xf32>
    %18 = vector.shape_cast %17 : vector<1x8x1024xf32> to vector<8x1024xf32>
    %19 = vector.shape_cast %16 : vector<8x1024xf32> to vector<1x8x1024xf32>
    tpu.vector_store %arg3[%c0_6, %c0_7, %c0_8], %19 {strides = array<i32>} : memref<1x8x1024xf32, #tpu.memory_space<vmem>>, vector<1x8x1024xf32>,
    return
  }
  func.func @transform_0(%arg0: i32) -> i32 {
    %c0_i32 = arith.constant 0 : i32
    %c0_i32_0 = arith.constant 0 : i32
    return %c0_i32 : i32
  }
  func.func @transform_1(%arg0: i32) -> (i32, i32, i32) {
    %c0_i32 = arith.constant 0 : i32
    %c0_i32_0 = arith.constant 0 : i32
    %c0_i32_1 = arith.constant 0 : i32
    return %arg0, %c0_i32, %c0_i32_0 : i32, i32, i32
  }
  func.func @transform_2(%arg0: i32) -> (i32, i32, i32) {
    %c0_i32 = arith.constant 0 : i32
    %c0_i32_0 = arith.constant 0 : i32
    %c0_i32_1 = arith.constant 0 : i32
    return %arg0, %c0_i32, %c0_i32_0 : i32, i32, i32
  }
}

</mosaic_0001>

<llo_original>
// kernel: tpu_custom_call.1
$region0: #{tpu_custom_call.1}
  #allocation0 [shape = 'u32[]', space=smem, size = 0x4, offset = 0x4, fixed_abs, tag = 'smem constant byte address 0x4 - core index']
  #allocation1 [shape = 'u32[144,128]{1,0:T(1,128)}', space=vmem, size = 0x12000, scoped, tag = 'internal scratch']
  #allocation2 [shape = 'f32[1]{0:T(128)S(6)}', space=smem, size = 0x200, scoped, tag = 'scoped memory for tpu_custom_call.1']
  %s0 = inlined_call_operand.<no memory space> [shape: f32[1], index: 0, kind: input, shape index: {}]
  %s1 = inlined_call_operand.hbm [shape: f32[2,8,1024], index: 1, kind: input, shape index: {}]
  %s2 = inlined_call_operand.hbm [shape: f32[2,8,1024], index: 2, kind: output, shape index: {}]
  %s3 = sld [smem:[#allocation0]]
  $region45: #{tpu_custom_call.1} parent=0
    _
  %s5 = ssub.s32 1, %s3
  %s6 = scalar_select 0, %s5, %s3
  %7 = sst [smem:[#allocation2]] %s0
  $region1: #{tpu_custom_call.1} parent=0
    #allocation3 [shape = 'u8[65536]{0}', space=vmem, size = 0x10000, scoped, tag = 'input window, operand 1']
    #allocation4 [shape = 's32[2]{0}', space=sflag, size = 0x8, scoped, tag = 'scoped memory for tpu_custom_call.1']
    #allocation5 [shape = 's32[2]{0}', space=sflag, size = 0x8, scoped, tag = 'scoped memory for tpu_custom_call.1']
    #allocation6 [shape = 'u8[65536]{0}', space=vmem, size = 0x10000, scoped, tag = 'output window, operand 0']
    %8 = vsyncpa [#allocation4], 0
    %s9 = scalar_lea.sflag [#allocation4], 1
    %10 = vsyncpa %s9, 0
    %11 = vsyncpa [#allocation5], 0
    %s12 = scalar_lea.sflag [#allocation5], 1
    %13 = vsyncpa %s12, 0
    loop: start=0, step=1, limit=4
    $region2: #{tpu_custom_call.1} parent=1 // loop_pre_header
      _
    $region3: #{tpu_custom_call.1} parent=1 // loop_header
      %s15 = sphi 0, %s19
      %p16 = scmp.ge.s32.totalorder %s15, 4
      %s23 = sphi 0, %s23
      %s25 = sphi 0, %s23
      %s26 = sphi 0, %s25
      %s40 = sphi 0, %s26
      %s46 = sphi 0, %s48
      %s49 = sphi 0, %s46
      %s50 = sphi 0, %s49
      %s66 = sphi 0, %s50
      %s72 = sphi 0, %s74
      %s75 = sphi 0, %s72
      %s76 = sphi 0, %s75
      %s92 = sphi 0, %s76
    $region4: #{tpu_custom_call.1} parent=1 // loop_header_branch
      %18 = sbr.rel (%p16) target = $region8
    $region5: #{tpu_custom_call.1} parent=1 // loop_body
      %s20 = ssub.s32 %s15, 1
      %s21 = ssub.s32 %s15, 2
      %s22 = sadd.s32 %s15, 1
      %s24 = sadd.s32 %s23, 1
      %p27 = scmp.eq.s32.totalorder %s15, 1
      %p28 = scmp.ne.s32.totalorder %s23, %s25
      %p29 = scmp.eq.s32.totalorder %s15, 0
      %p30 = por %p28, %p29
      %p31 = scmp.ne.s32.totalorder %s23, %s25
      %p32 = scmp.eq.s32.totalorder %s20, 1
      %p33 = por %p31, %p32
      %p34 = scmp.ne.s32.totalorder %s25, %s26
      %p35 = scmp.eq.s32.totalorder %s20, 0
      %p36 = por %p34, %p35
      %p37 = scmp.ne.s32.totalorder %s25, %s26
      %p38 = scmp.eq.s32.totalorder %s21, 1
      %p39 = por %p37, %p38
      %p41 = scmp.ne.s32.totalorder %s26, %s40
      %p42 = scmp.eq.s32.totalorder %s21, 0
      %p43 = por %p41, %p42
      %s44 = ssub.s32 %s15, %s22
      %p45 = scmp.eq.s32.totalorder %s44, 0
      %s47 = sadd.s32 %s46, 1
      %s48 = scalar_select %p45, %s46, %s47
      %p51 = pneg %p45
      %p52 = scmp.eq.s32.totalorder %s15, 1
      %p53 = por %p51, %p52
      %p54 = scmp.ne.s32.totalorder %s46, %s49
      %p55 = scmp.eq.s32.totalorder %s15, 0
      %p56 = por %p54, %p55
      %p57 = scmp.ne.s32.totalorder %s46, %s49
      %p58 = scmp.eq.s32.totalorder %s20, 1
      %p59 = por %p57, %p58
      %p60 = scmp.ne.s32.totalorder %s49, %s50
      %p61 = scmp.eq.s32.totalorder %s20, 0
      %p62 = por %p60, %p61
      %p63 = scmp.ne.s32.totalorder %s49, %s50
      %p64 = scmp.eq.s32.totalorder %s21, 1
      %p65 = por %p63, %p64
      %p67 = scmp.ne.s32.totalorder %s50, %s66
      %p68 = scmp.eq.s32.totalorder %s21, 0
      %p69 = por %p67, %p68
      %s70 = ssub.s32 %s15, %s22
      %p71 = scmp.eq.s32.totalorder %s70, 0
      %s73 = sadd.s32 %s72, 1
      %s74 = scalar_select %p71, %s72, %s73
      %p77 = pneg %p71
      %p78 = scmp.eq.s32.totalorder %s15, 1
      %p79 = por %p77, %p78
      %p80 = scmp.ne.s32.totalorder %s72, %s75
      %p81 = scmp.eq.s32.totalorder %s15, 0
      %p82 = por %p80, %p81
      %p83 = scmp.ne.s32.totalorder %s72, %s75
      %p84 = scmp.eq.s32.totalorder %s20, 1
      %p85 = por %p83, %p84
      %p86 = scmp.ne.s32.totalorder %s75, %s76
      %p87 = scmp.eq.s32.totalorder %s20, 0
      %p88 = por %p86, %p87
      %p89 = scmp.ne.s32.totalorder %s75, %s76
      %p90 = scmp.eq.s32.totalorder %s21, 1
      %p91 = por %p89, %p90
      %p93 = scmp.ne.s32.totalorder %s76, %s92
      %p94 = scmp.eq.s32.totalorder %s21, 0
      %p95 = por %p93, %p94
      %p96 = scmp.le.s32.totalorder 1, %s15
      %p97 = scmp.lt.s32.totalorder %s15, 3
      %p98 = pnand %p96, %p97
      %p99 = pneg %p98
      // Predicated region
      $region9: #{tpu_custom_call.1} parent=5 // pred_check
        _
      $region10: #{tpu_custom_call.1} parent=5 // pred_check_branch
        %101 = sbr.rel (%p98) target = $region12
      $region11: #{tpu_custom_call.1} parent=5 // pred_region
        %s102 = ssub.s32 %s15, 1
        // Predicated region
        $region13: #{tpu_custom_call.1} parent=11 // pred_check
          %p103 = pneg %p36
        $region14: #{tpu_custom_call.1} parent=11 // pred_check_branch
          %105 = sbr.rel (%p103) target = $region16
        $region15: #{tpu_custom_call.1} parent=11 // pred_region
          _
        $region16: #{tpu_custom_call.1} parent=11 // pred_fallthru
          _
      $region12: #{tpu_custom_call.1} parent=5 // pred_fallthru
        _
      %p106 = scmp.lt.s32.totalorder %s15, 2
      // Predicated region
      $region17: #{tpu_custom_call.1} parent=5 // pred_check
        %p107 = pneg %p106
      $region18: #{tpu_custom_call.1} parent=5 // pred_check_branch
        %109 = sbr.rel (%p107) target = $region20
      $region19: #{tpu_custom_call.1} parent=5 // pred_region
        // Predicated region
        $region21: #{tpu_custom_call.1} parent=19 // pred_check
          %p110 = pneg %p56
        $region22: #{tpu_custom_call.1} parent=19 // pred_check_branch
          %112 = sbr.rel (%p110) target = $region24
        $region23: #{tpu_custom_call.1} parent=19 // pred_region
          %s113 = sand.u32 %s46, 1
          %s114 = scalar_lea.sflag [#allocation4], %s113
          %s115 = sand.u32 %s46, 1
          %s116 = smul.addr %s115, 64
          %s117 = scalar_lea.vmem [#allocation3], %s116
          %s119 = ssub.s32 1024, 1024
          %120 = vsyncadd %s114, %s119
          %s121 = smul.addr %s15, 8
          %s122 = smul.addr %s121, 128
          %s123 = scalar_lea.hbm %s1, %s122
          %s125 = sshll.u32 %s117, 4
          %s126 = int_to_ptr.vmem [resolvable:$true] %s125
          %128 = dma.hbm_to_vmem [thread:$0]  %s123, 1024, %s126, %s114
        $region24: #{tpu_custom_call.1} parent=19 // pred_fallthru
          _
      $region20: #{tpu_custom_call.1} parent=5 // pred_fallthru
        _
      %p129 = scmp.le.s32.totalorder 1, %s15
      %p130 = scmp.lt.s32.totalorder %s15, 3
      %p131 = pnand %p129, %p130
      %p132 = pneg %p131
      // Predicated region
      $region25: #{tpu_custom_call.1} parent=5 // pred_check
        _
      $region26: #{tpu_custom_call.1} parent=5 // pred_check_branch
        %134 = sbr.rel (%p131) target = $region28
      $region27: #{tpu_custom_call.1} parent=5 // pred_region
        %s135 = ssub.s32 %s15, 1
        %s136 = sand.u32 %s49, 1
        %s137 = scalar_lea.sflag [#allocation4], %s136
        %s138 = sand.u32 %s49, 1
        %s139 = smul.addr %s138, 64
        %s140 = scalar_lea.vmem [#allocation3], %s139
        // Predicated region
        $region29: #{tpu_custom_call.1} parent=27 // pred_check
          %p141 = pneg %p62
        $region30: #{tpu_custom_call.1} parent=27 // pred_check_branch
          %143 = sbr.rel (%p141) target = $region32
        $region31: #{tpu_custom_call.1} parent=27 // pred_region
          %144 = dma.done %s137, 1024
        $region32: #{tpu_custom_call.1} parent=27 // pred_fallthru
          _
        %p145 = pneg %p36
        %p146 = pneg %p33
        %s147 = sand.u32 %s49, 1
        %s148 = scalar_lea.sflag [#allocation4], %s147
        %s149 = sand.u32 %s49, 1
        %s150 = smul.addr %s149, 64
        %s151 = scalar_lea.vmem [#allocation3], %s150
        %p152 = pneg %p62
        %p153 = pneg %p59
        %p154 = pneg %p88
        %p155 = pneg %p85
        %s156 = sand.u32 %s75, 1
        %s157 = scalar_lea.sflag [#allocation5], %s156
        %s158 = sand.u32 %s75, 1
        %s159 = smul.addr %s158, 64
        %s160 = scalar_lea.vmem [#allocation6], %s159
        %v161 = vld [vmem:[%s140] sm:$0xff]
        %v162 = vld [vmem:[%s140 + $0x8] sm:$0xff]
        %v163 = vld [vmem:[%s140 + $0x10] sm:$0xff]
        %v164 = vld [vmem:[%s140 + $0x18] sm:$0xff]
        %v165 = vld [vmem:[%s140 + $0x20] sm:$0xff]
        %v166 = vld [vmem:[%s140 + $0x28] sm:$0xff]
        %v167 = vld [vmem:[%s140 + $0x30] sm:$0xff]
        %v168 = vld [vmem:[%s140 + $0x38] sm:$0xff]
        %169 = vmatprep.subr.mxu0 %v162
        %170 = vmatpush1.xpose.msra.mxu0 %v161
        %171 = vmatprep.subr.mxu0 0.0
        %172 = vmatpush1.xpose.msra.mxu0 0.0
        %173 = vmatprep.subr.mxu0 0.0
        %174 = vmatpush1.xpose.msra.mxu0 0.0
        %175 = vmatprep.subr.mxu0 0.0
        %176 = vmatpush1.xpose.msra.mxu0 0.0
        %177 = vmatprep.subr.mxu0 0.0
        %178 = vmatpush1.xpose.msra.mxu0 0.0
        %179 = vmatprep.subr.mxu0 0.0
        %180 = vmatpush1.xpose.msra.mxu0 0.0
        %181 = vmatprep.subr.mxu0 0.0
        %182 = vmatpush1.xpose.msra.mxu0 0.0
        %183 = vmatprep.subr.mxu0 0.0
        %184 = vmatpush1.xpose.msra.mxu0 0.0
        %185 = vmatprep.subr.mxu0 0.0
        %186 = vmatpush1.xpose.msra.mxu0 0.0
        %187 = vmatprep.subr.mxu0 0.0
        %188 = vmatpush1.xpose.msra.mxu0 0.0
        %189 = vmatprep.subr.mxu0 0.0
        %190 = vmatpush1.xpose.msra.mxu0 0.0
        %191 = vmatprep.subr.mxu0 0.0
        %192 = vmatpush1.xpose.msra.mxu0 0.0
        %193 = vmatprep.subr.mxu0 0.0
        %194 = vmatpush1.xpose.msra.mxu0 0.0
        %195 = vmatprep.subr.mxu0 0.0
        %196 = vmatpush1.xpose.msra.mxu0 0.0
        %197 = vmatprep.subr.mxu0 0.0
        %198 = vmatpush1.xpose.msra.mxu0 0.0
        %199 = vmatprep.subr.mxu0 0.0
        %200 = vmatpush1.xpose.msra.mxu0 0.0
        %201 = vmatprep.subr.mxu0 0.0
        %202 = vmatpush1.xpose.msra.mxu0 0.0
        %203 = vmatprep.subr.mxu0 0.0
        %204 = vmatpush1.xpose.msra.mxu0 0.0
        %205 = vmatprep.subr.mxu0 0.0
        %206 = vmatpush1.xpose.msra.mxu0 0.0
        %207 = vmatprep.subr.mxu0 0.0
        %208 = vmatpush1.xpose.msra.mxu0 0.0
        %209 = vmatprep.subr.mxu0 0.0
        %210 = vmatpush1.xpose.msra.mxu0 0.0
        %211 = vmatprep.subr.mxu0 0.0
        %212 = vmatpush1.xpose.msra.mxu0 0.0
        %213 = vmatprep.subr.mxu0 0.0
        %214 = vmatpush1.xpose.msra.mxu0 0.0
        %215 = vmatprep.subr.mxu0 0.0
        %216 = vmatpush1.xpose.msra.mxu0 0.0
        %217 = vmatprep.subr.mxu0 0.0
        %218 = vmatpush1.xpose.msra.mxu0 0.0
        %219 = vmatprep.subr.mxu0 0.0
        %220 = vmatpush1.xpose.msra.mxu0 0.0
        %221 = vmatprep.subr.mxu0 0.0
        %222 = vmatpush1.xpose.msra.mxu0 0.0
        %223 = vmatprep.subr.mxu0 0.0
        %224 = vmatpush1.xpose.msra.mxu0 0.0
        %225 = vmatprep.subr.mxu0 0.0
        %226 = vmatpush1.xpose.msra.mxu0 0.0
        %227 = vmatprep.subr.mxu0 0.0
        %228 = vmatpush1.xpose.msra.mxu0 0.0
        %229 = vmatprep.subr.mxu0 0.0
        %230 = vmatpush1.xpose.msra.mxu0 0.0
        %231 = vmatprep.subr.mxu0 0.0
        %232 = vmatpush1.xpose.msra.mxu0 0.0
        %233 = vmatprep.mubr.f32.mxu0 %v162
        %234 = vmatmul.mubr.f32.gmra.mrb[0].mxu0 %v161
        %v235 = vpop.f32.mrb[0].mxu0
        %v236 = vadd.f32 0.0, %v235
        %v237 = vpop.f32.mrb[0].mxu0
        %238 = vdwg.mxu0
        %239 = vmatprep.subr.mxu0 %v164
        %240 = vmatpush1.xpose.msra.mxu0 %v163
        %241 = vmatprep.subr.mxu0 0.0
        %242 = vmatpush1.xpose.msra.mxu0 0.0
        %243 = vmatprep.subr.mxu0 0.0
        %244 = vmatpush1.xpose.msra.mxu0 0.0
        %245 = vmatprep.subr.mxu0 0.0
        %246 = vmatpush1.xpose.msra.mxu0 0.0
        %247 = vmatprep.subr.mxu0 0.0
        %248 = vmatpush1.xpose.msra.mxu0 0.0
        %249 = vmatprep.subr.mxu0 0.0
        %250 = vmatpush1.xpose.msra.mxu0 0.0
        %251 = vmatprep.subr.mxu0 0.0
        %252 = vmatpush1.xpose.msra.mxu0 0.0
        %253 = vmatprep.subr.mxu0 0.0
        %254 = vmatpush1.xpose.msra.mxu0 0.0
        %255 = vmatprep.subr.mxu0 0.0
        %256 = vmatpush1.xpose.msra.mxu0 0.0
        %257 = vmatprep.subr.mxu0 0.0
        %258 = vmatpush1.xpose.msra.mxu0 0.0
        %259 = vmatprep.subr.mxu0 0.0
        %260 = vmatpush1.xpose.msra.mxu0 0.0
        %261 = vmatprep.subr.mxu0 0.0
        %262 = vmatpush1.xpose.msra.mxu0 0.0
        %263 = vmatprep.subr.mxu0 0.0
        %264 = vmatpush1.xpose.msra.mxu0 0.0
        %265 = vmatprep.subr.mxu0 0.0
        %266 = vmatpush1.xpose.msra.mxu0 0.0
        %267 = vmatprep.subr.mxu0 0.0
        %268 = vmatpush1.xpose.msra.mxu0 0.0
        %269 = vmatprep.subr.mxu0 0.0
        %270 = vmatpush1.xpose.msra.mxu0 0.0
        %271 = vmatprep.subr.mxu0 0.0
        %272 = vmatpush1.xpose.msra.mxu0 0.0
        %273 = vmatprep.subr.mxu0 0.0
        %274 = vmatpush1.xpose.msra.mxu0 0.0
        %275 = vmatprep.subr.mxu0 0.0
        %276 = vmatpush1.xpose.msra.mxu0 0.0
        %277 = vmatprep.subr.mxu0 0.0
        %278 = vmatpush1.xpose.msra.mxu0 0.0
        %279 = vmatprep.subr.mxu0 0.0
        %280 = vmatpush1.xpose.msra.mxu0 0.0
        %281 = vmatprep.subr.mxu0 0.0
        %282 = vmatpush1.xpose.msra.mxu0 0.0
        %283 = vmatprep.subr.mxu0 0.0
        %284 = vmatpush1.xpose.msra.mxu0 0.0
        %285 = vmatprep.subr.mxu0 0.0
        %286 = vmatpush1.xpose.msra.mxu0 0.0
        %287 = vmatprep.subr.mxu0 0.0
        %288 = vmatpush1.xpose.msra.mxu0 0.0
        %289 = vmatprep.subr.mxu0 0.0
        %290 = vmatpush1.xpose.msra.mxu0 0.0
        %291 = vmatprep.subr.mxu0 0.0
        %292 = vmatpush1.xpose.msra.mxu0 0.0
        %293 = vmatprep.subr.mxu0 0.0
        %294 = vmatpush1.xpose.msra.mxu0 0.0
        %295 = vmatprep.subr.mxu0 0.0
        %296 = vmatpush1.xpose.msra.mxu0 0.0
        %297 = vmatprep.subr.mxu0 0.0
        %298 = vmatpush1.xpose.msra.mxu0 0.0
        %299 = vmatprep.subr.mxu0 0.0
        %300 = vmatpush1.xpose.msra.mxu0 0.0
        %301 = vmatprep.subr.mxu0 0.0
        %302 = vmatpush1.xpose.msra.mxu0 0.0
        %303 = vmatprep.mubr.f32.mxu0 %v164
        %304 = vmatmul.mubr.f32.gmra.mrb[0].mxu0 %v163
        %v305 = vpop.f32.mrb[0].mxu0
        %v306 = vadd.f32 %v236, %v305
        %v307 = vpop.f32.mrb[0].mxu0
        %308 = vdwg.mxu0
        %309 = vmatprep.subr.mxu0 %v166
        %310 = vmatpush1.xpose.msra.mxu0 %v165
        %311 = vmatprep.subr.mxu0 0.0
        %312 = vmatpush1.xpose.msra.mxu0 0.0
        %313 = vmatprep.subr.mxu0 0.0
        %314 = vmatpush1.xpose.msra.mxu0 0.0
        %315 = vmatprep.subr.mxu0 0.0
        %316 = vmatpush1.xpose.msra.mxu0 0.0
        %317 = vmatprep.subr.mxu0 0.0
        %318 = vmatpush1.xpose.msra.mxu0 0.0
        %319 = vmatprep.subr.mxu0 0.0
        %320 = vmatpush1.xpose.msra.mxu0 0.0
        %321 = vmatprep.subr.mxu0 0.0
        %322 = vmatpush1.xpose.msra.mxu0 0.0
        %323 = vmatprep.subr.mxu0 0.0
        %324 = vmatpush1.xpose.msra.mxu0 0.0
        %325 = vmatprep.subr.mxu0 0.0
        %326 = vmatpush1.xpose.msra.mxu0 0.0
        %327 = vmatprep.subr.mxu0 0.0
        %328 = vmatpush1.xpose.msra.mxu0 0.0
        %329 = vmatprep.subr.mxu0 0.0
        %330 = vmatpush1.xpose.msra.mxu0 0.0
        %331 = vmatprep.subr.mxu0 0.0
        %332 = vmatpush1.xpose.msra.mxu0 0.0
        %333 = vmatprep.subr.mxu0 0.0
        %334 = vmatpush1.xpose.msra.mxu0 0.0
        %335 = vmatprep.subr.mxu0 0.0
        %336 = vmatpush1.xpose.msra.mxu0 0.0
        %337 = vmatprep.subr.mxu0 0.0
        %338 = vmatpush1.xpose.msra.mxu0 0.0
        %339 = vmatprep.subr.mxu0 0.0
        %340 = vmatpush1.xpose.msra.mxu0 0.0
        %341 = vmatprep.subr.mxu0 0.0
        %342 = vmatpush1.xpose.msra.mxu0 0.0
        %343 = vmatprep.subr.mxu0 0.0
        %344 = vmatpush1.xpose.msra.mxu0 0.0
        %345 = vmatprep.subr.mxu0 0.0
        %346 = vmatpush1.xpose.msra.mxu0 0.0
        %347 = vmatprep.subr.mxu0 0.0
        %348 = vmatpush1.xpose.msra.mxu0 0.0
        %349 = vmatprep.subr.mxu0 0.0
        %350 = vmatpush1.xpose.msra.mxu0 0.0
        %351 = vmatprep.subr.mxu0 0.0
        %352 = vmatpush1.xpose.msra.mxu0 0.0
        %353 = vmatprep.subr.mxu0 0.0
        %354 = vmatpush1.xpose.msra.mxu0 0.0
        %355 = vmatprep.subr.mxu0 0.0
        %356 = vmatpush1.xpose.msra.mxu0 0.0
        %357 = vmatprep.subr.mxu0 0.0
        %358 = vmatpush1.xpose.msra.mxu0 0.0
        %359 = vmatprep.subr.mxu0 0.0
        %360 = vmatpush1.xpose.msra.mxu0 0.0
        %361 = vmatprep.subr.mxu0 0.0
        %362 = vmatpush1.xpose.msra.mxu0 0.0
        %363 = vmatprep.subr.mxu0 0.0
        %364 = vmatpush1.xpose.msra.mxu0 0.0
        %365 = vmatprep.subr.mxu0 0.0
        %366 = vmatpush1.xpose.msra.mxu0 0.0
        %367 = vmatprep.subr.mxu0 0.0
        %368 = vmatpush1.xpose.msra.mxu0 0.0
        %369 = vmatprep.subr.mxu0 0.0
        %370 = vmatpush1.xpose.msra.mxu0 0.0
        %371 = vmatprep.subr.mxu0 0.0
        %372 = vmatpush1.xpose.msra.mxu0 0.0
        %373 = vmatprep.mubr.f32.mxu0 %v166
        %374 = vmatmul.mubr.f32.gmra.mrb[0].mxu0 %v165
        %v375 = vpop.f32.mrb[0].mxu0
        %v376 = vadd.f32 %v306, %v375
        %v377 = vpop.f32.mrb[0].mxu0
        %378 = vdwg.mxu0
        %379 = vmatprep.subr.mxu0 %v168
        %380 = vmatpush1.xpose.msra.mxu0 %v167
        %381 = vmatprep.subr.mxu0 0.0
        %382 = vmatpush1.xpose.msra.mxu0 0.0
        %383 = vmatprep.subr.mxu0 0.0
        %384 = vmatpush1.xpose.msra.mxu0 0.0
        %385 = vmatprep.subr.mxu0 0.0
        %386 = vmatpush1.xpose.msra.mxu0 0.0
        %387 = vmatprep.subr.mxu0 0.0
        %388 = vmatpush1.xpose.msra.mxu0 0.0
        %389 = vmatprep.subr.mxu0 0.0
        %390 = vmatpush1.xpose.msra.mxu0 0.0
        %391 = vmatprep.subr.mxu0 0.0
        %392 = vmatpush1.xpose.msra.mxu0 0.0
        %393 = vmatprep.subr.mxu0 0.0
        %394 = vmatpush1.xpose.msra.mxu0 0.0
        %395 = vmatprep.subr.mxu0 0.0
        %396 = vmatpush1.xpose.msra.mxu0 0.0
        %397 = vmatprep.subr.mxu0 0.0
        %398 = vmatpush1.xpose.msra.mxu0 0.0
        %399 = vmatprep.subr.mxu0 0.0
        %400 = vmatpush1.xpose.msra.mxu0 0.0
        %401 = vmatprep.subr.mxu0 0.0
        %402 = vmatpush1.xpose.msra.mxu0 0.0
        %403 = vmatprep.subr.mxu0 0.0
        %404 = vmatpush1.xpose.msra.mxu0 0.0
        %405 = vmatprep.subr.mxu0 0.0
        %406 = vmatpush1.xpose.msra.mxu0 0.0
        %407 = vmatprep.subr.mxu0 0.0
        %408 = vmatpush1.xpose.msra.mxu0 0.0
        %409 = vmatprep.subr.mxu0 0.0
        %410 = vmatpush1.xpose.msra.mxu0 0.0
        %411 = vmatprep.subr.mxu0 0.0
        %412 = vmatpush1.xpose.msra.mxu0 0.0
        %413 = vmatprep.subr.mxu0 0.0
        %414 = vmatpush1.xpose.msra.mxu0 0.0
        %415 = vmatprep.subr.mxu0 0.0
        %416 = vmatpush1.xpose.msra.mxu0 0.0
        %417 = vmatprep.subr.mxu0 0.0
        %418 = vmatpush1.xpose.msra.mxu0 0.0
        %419 = vmatprep.subr.mxu0 0.0
        %420 = vmatpush1.xpose.msra.mxu0 0.0
        %421 = vmatprep.subr.mxu0 0.0
        %422 = vmatpush1.xpose.msra.mxu0 0.0
        %423 = vmatprep.subr.mxu0 0.0
        %424 = vmatpush1.xpose.msra.mxu0 0.0
        %425 = vmatprep.subr.mxu0 0.0
        %426 = vmatpush1.xpose.msra.mxu0 0.0
        %427 = vmatprep.subr.mxu0 0.0
        %428 = vmatpush1.xpose.msra.mxu0 0.0
        %429 = vmatprep.subr.mxu0 0.0
        %430 = vmatpush1.xpose.msra.mxu0 0.0
        %431 = vmatprep.subr.mxu0 0.0
        %432 = vmatpush1.xpose.msra.mxu0 0.0
        %433 = vmatprep.subr.mxu0 0.0
        %434 = vmatpush1.xpose.msra.mxu0 0.0
        %435 = vmatprep.subr.mxu0 0.0
        %436 = vmatpush1.xpose.msra.mxu0 0.0
        %437 = vmatprep.subr.mxu0 0.0
        %438 = vmatpush1.xpose.msra.mxu0 0.0
        %439 = vmatprep.subr.mxu0 0.0
        %440 = vmatpush1.xpose.msra.mxu0 0.0
        %441 = vmatprep.subr.mxu0 0.0
        %442 = vmatpush1.xpose.msra.mxu0 0.0
        %443 = vmatprep.mubr.f32.mxu0 %v168
        %444 = vmatmul.mubr.f32.gmra.mrb[0].mxu0 %v167
        %v445 = vpop.f32.mrb[0].mxu0
        %v446 = vadd.f32 %v376, %v445
        %v447 = vpop.f32.mrb[0].mxu0
        %448 = vdwg.mxu0
        %vm449 = vcmask 64512
        %v450 = vsel %vm449, %v446, inf
        %451 = vmin.xlane.f32.xlu0 %v450
        %v452 = vpop.xlane.xlu0 %451
        %v453 = vsub.f32 %v452, %v446
        %v454 = vmul.f32 %v453, 1.442695
        %v455 = vpow.pop %v454
        %v456 = vsel %vm449, %v455, 0.0
        %457 = vadd.xlane.f32.xlu0 %v456
        %v458 = vpop.xlane.xlu0 %457
        %v459 = vrcp.pop %v458
        %v460 = vmul.f32 %v455, %v459
        %s461 = sld [smem:[#allocation2]]
        %v462 = vstv %s461
        %v463 = vmul.f32 %v462, %v460
        %v465 = vsel %vm449, %v463, 0
        %467 = vmatprep.subr.mxu0 %v162
        %468 = vmatpush1.msra.mxu0 %v161
        %469 = vmatprep.subr.mxu0 0.0
        %470 = vmatpush1.msra.mxu0 0.0
        %471 = vmatprep.subr.mxu0 0.0
        %472 = vmatpush1.msra.mxu0 0.0
        %473 = vmatprep.subr.mxu0 0.0
        %474 = vmatpush1.msra.mxu0 0.0
        %475 = vmatprep.subr.mxu0 0.0
        %476 = vmatpush1.msra.mxu0 0.0
        %477 = vmatprep.subr.mxu0 0.0
        %478 = vmatpush1.msra.mxu0 0.0
        %479 = vmatprep.subr.mxu0 0.0
        %480 = vmatpush1.msra.mxu0 0.0
        %481 = vmatprep.subr.mxu0 0.0
        %482 = vmatpush1.msra.mxu0 0.0
        %483 = vmatprep.subr.mxu0 0.0
        %484 = vmatpush1.msra.mxu0 0.0
        %485 = vmatprep.subr.mxu0 0.0
        %486 = vmatpush1.msra.mxu0 0.0
        %487 = vmatprep.subr.mxu0 0.0
        %488 = vmatpush1.msra.mxu0 0.0
        %489 = vmatprep.subr.mxu0 0.0
        %490 = vmatpush1.msra.mxu0 0.0
        %491 = vmatprep.subr.mxu0 0.0
        %492 = vmatpush1.msra.mxu0 0.0
        %493 = vmatprep.subr.mxu0 0.0
        %494 = vmatpush1.msra.mxu0 0.0
        %495 = vmatprep.subr.mxu0 0.0
        %496 = vmatpush1.msra.mxu0 0.0
        %497 = vmatprep.subr.mxu0 0.0
        %498 = vmatpush1.msra.mxu0 0.0
        %499 = vmatprep.subr.mxu0 0.0
        %500 = vmatpush1.msra.mxu0 0.0
        %501 = vmatprep.subr.mxu0 0.0
        %502 = vmatpush1.msra.mxu0 0.0
        %503 = vmatprep.subr.mxu0 0.0
        %504 = vmatpush1.msra.mxu0 0.0
        %505 = vmatprep.subr.mxu0 0.0
        %506 = vmatpush1.msra.mxu0 0.0
        %507 = vmatprep.subr.mxu0 0.0
        %508 = vmatpush1.msra.mxu0 0.0
        %509 = vmatprep.subr.mxu0 0.0
        %510 = vmatpush1.msra.mxu0 0.0
        %511 = vmatprep.subr.mxu0 0.0
        %512 = vmatpush1.msra.mxu0 0.0
        %513 = vmatprep.subr.mxu0 0.0
        %514 = vmatpush1.msra.mxu0 0.0
        %515 = vmatprep.subr.mxu0 0.0
        %516 = vmatpush1.msra.mxu0 0.0
        %517 = vmatprep.subr.mxu0 0.0
        %518 = vmatpush1.msra.mxu0 0.0
        %519 = vmatprep.subr.mxu0 0.0
        %520 = vmatpush1.msra.mxu0 0.0
        %521 = vmatprep.subr.mxu0 0.0
        %522 = vmatpush1.msra.mxu0 0.0
        %523 = vmatprep.subr.mxu0 0.0
        %524 = vmatpush1.msra.mxu0 0.0
        %525 = vmatprep.subr.mxu0 0.0
        %526 = vmatpush1.msra.mxu0 0.0
        %527 = vmatprep.subr.mxu0 0.0
        %528 = vmatpush1.msra.mxu0 0.0
        %529 = vmatprep.subr.mxu0 0.0
        %530 = vmatpush1.msra.mxu0 0.0
        %531 = vmatprep.mubr.f32.mxu0 0.0
        %532 = vmatmul.mubr.f32.gmra.mrb[0].mxu0 %v465
        %v533 = vpop.f32.mrb[0].mxu0
        %v534 = vadd.f32 %v161, %v533
        %v535 = vpop.f32.mrb[0].mxu0
        %v536 = vadd.f32 %v162, %v535
        %537 = vdwg.mxu0
        %538 = vmatprep.subr.mxu0 %v164
        %539 = vmatpush1.msra.mxu0 %v163
        %540 = vmatprep.subr.mxu0 0.0
        %541 = vmatpush1.msra.mxu0 0.0
        %542 = vmatprep.subr.mxu0 0.0
        %543 = vmatpush1.msra.mxu0 0.0
        %544 = vmatprep.subr.mxu0 0.0
        %545 = vmatpush1.msra.mxu0 0.0
        %546 = vmatprep.subr.mxu0 0.0
        %547 = vmatpush1.msra.mxu0 0.0
        %548 = vmatprep.subr.mxu0 0.0
        %549 = vmatpush1.msra.mxu0 0.0
        %550 = vmatprep.subr.mxu0 0.0
        %551 = vmatpush1.msra.mxu0 0.0
        %552 = vmatprep.subr.mxu0 0.0
        %553 = vmatpush1.msra.mxu0 0.0
        %554 = vmatprep.subr.mxu0 0.0
        %555 = vmatpush1.msra.mxu0 0.0
        %556 = vmatprep.subr.mxu0 0.0
        %557 = vmatpush1.msra.mxu0 0.0
        %558 = vmatprep.subr.mxu0 0.0
        %559 = vmatpush1.msra.mxu0 0.0
        %560 = vmatprep.subr.mxu0 0.0
        %561 = vmatpush1.msra.mxu0 0.0
        %562 = vmatprep.subr.mxu0 0.0
        %563 = vmatpush1.msra.mxu0 0.0
        %564 = vmatprep.subr.mxu0 0.0
        %565 = vmatpush1.msra.mxu0 0.0
        %566 = vmatprep.subr.mxu0 0.0
        %567 = vmatpush1.msra.mxu0 0.0
        %568 = vmatprep.subr.mxu0 0.0
        %569 = vmatpush1.msra.mxu0 0.0
        %570 = vmatprep.subr.mxu0 0.0
        %571 = vmatpush1.msra.mxu0 0.0
        %572 = vmatprep.subr.mxu0 0.0
        %573 = vmatpush1.msra.mxu0 0.0
        %574 = vmatprep.subr.mxu0 0.0
        %575 = vmatpush1.msra.mxu0 0.0
        %576 = vmatprep.subr.mxu0 0.0
        %577 = vmatpush1.msra.mxu0 0.0
        %578 = vmatprep.subr.mxu0 0.0
        %579 = vmatpush1.msra.mxu0 0.0
        %580 = vmatprep.subr.mxu0 0.0
        %581 = vmatpush1.msra.mxu0 0.0
        %582 = vmatprep.subr.mxu0 0.0
        %583 = vmatpush1.msra.mxu0 0.0
        %584 = vmatprep.subr.mxu0 0.0
        %585 = vmatpush1.msra.mxu0 0.0
        %586 = vmatprep.subr.mxu0 0.0
        %587 = vmatpush1.msra.mxu0 0.0
        %588 = vmatprep.subr.mxu0 0.0
        %589 = vmatpush1.msra.mxu0 0.0
        %590 = vmatprep.subr.mxu0 0.0
        %591 = vmatpush1.msra.mxu0 0.0
        %592 = vmatprep.subr.mxu0 0.0
        %593 = vmatpush1.msra.mxu0 0.0
        %594 = vmatprep.subr.mxu0 0.0
        %595 = vmatpush1.msra.mxu0 0.0
        %596 = vmatprep.subr.mxu0 0.0
        %597 = vmatpush1.msra.mxu0 0.0
        %598 = vmatprep.subr.mxu0 0.0
        %599 = vmatpush1.msra.mxu0 0.0
        %600 = vmatprep.subr.mxu0 0.0
        %601 = vmatpush1.msra.mxu0 0.0
        %602 = vmatprep.mubr.f32.mxu0 0.0
        %603 = vmatmul.mubr.f32.gmra.mrb[0].mxu0 %v465
        %v604 = vpop.f32.mrb[0].mxu0
        %v605 = vadd.f32 %v163, %v604
        %v606 = vpop.f32.mrb[0].mxu0
        %v607 = vadd.f32 %v164, %v606
        %608 = vdwg.mxu0
        %609 = vmatprep.subr.mxu0 %v166
        %610 = vmatpush1.msra.mxu0 %v165
        %611 = vmatprep.subr.mxu0 0.0
        %612 = vmatpush1.msra.mxu0 0.0
        %613 = vmatprep.subr.mxu0 0.0
        %614 = vmatpush1.msra.mxu0 0.0
        %615 = vmatprep.subr.mxu0 0.0
        %616 = vmatpush1.msra.mxu0 0.0
        %617 = vmatprep.subr.mxu0 0.0
        %618 = vmatpush1.msra.mxu0 0.0
        %619 = vmatprep.subr.mxu0 0.0
        %620 = vmatpush1.msra.mxu0 0.0
        %621 = vmatprep.subr.mxu0 0.0
        %622 = vmatpush1.msra.mxu0 0.0
        %623 = vmatprep.subr.mxu0 0.0
        %624 = vmatpush1.msra.mxu0 0.0
        %625 = vmatprep.subr.mxu0 0.0
        %626 = vmatpush1.msra.mxu0 0.0
        %627 = vmatprep.subr.mxu0 0.0
        %628 = vmatpush1.msra.mxu0 0.0
        %629 = vmatprep.subr.mxu0 0.0
        %630 = vmatpush1.msra.mxu0 0.0
        %631 = vmatprep.subr.mxu0 0.0
        %632 = vmatpush1.msra.mxu0 0.0
        %633 = vmatprep.subr.mxu0 0.0
        %634 = vmatpush1.msra.mxu0 0.0
        %635 = vmatprep.subr.mxu0 0.0
        %636 = vmatpush1.msra.mxu0 0.0
        %637 = vmatprep.subr.mxu0 0.0
        %638 = vmatpush1.msra.mxu0 0.0
        %639 = vmatprep.subr.mxu0 0.0
        %640 = vmatpush1.msra.mxu0 0.0
        %641 = vmatprep.subr.mxu0 0.0
        %642 = vmatpush1.msra.mxu0 0.0
        %643 = vmatprep.subr.mxu0 0.0
        %644 = vmatpush1.msra.mxu0 0.0
        %645 = vmatprep.subr.mxu0 0.0
        %646 = vmatpush1.msra.mxu0 0.0
        %647 = vmatprep.subr.mxu0 0.0
        %648 = vmatpush1.msra.mxu0 0.0
        %649 = vmatprep.subr.mxu0 0.0
        %650 = vmatpush1.msra.mxu0 0.0
        %651 = vmatprep.subr.mxu0 0.0
        %652 = vmatpush1.msra.mxu0 0.0
        %653 = vmatprep.subr.mxu0 0.0
        %654 = vmatpush1.msra.mxu0 0.0
        %655 = vmatprep.subr.mxu0 0.0
        %656 = vmatpush1.msra.mxu0 0.0
        %657 = vmatprep.subr.mxu0 0.0
        %658 = vmatpush1.msra.mxu0 0.0
        %659 = vmatprep.subr.mxu0 0.0
        %660 = vmatpush1.msra.mxu0 0.0
        %661 = vmatprep.subr.mxu0 0.0
        %662 = vmatpush1.msra.mxu0 0.0
        %663 = vmatprep.subr.mxu0 0.0
        %664 = vmatpush1.msra.mxu0 0.0
        %665 = vmatprep.subr.mxu0 0.0
        %666 = vmatpush1.msra.mxu0 0.0
        %667 = vmatprep.subr.mxu0 0.0
        %668 = vmatpush1.msra.mxu0 0.0
        %669 = vmatprep.subr.mxu0 0.0
        %670 = vmatpush1.msra.mxu0 0.0
        %671 = vmatprep.subr.mxu0 0.0
        %672 = vmatpush1.msra.mxu0 0.0
        %673 = vmatprep.mubr.f32.mxu0 0.0
        %674 = vmatmul.mubr.f32.gmra.mrb[0].mxu0 %v465
        %v675 = vpop.f32.mrb[0].mxu0
        %v676 = vadd.f32 %v165, %v675
        %v677 = vpop.f32.mrb[0].mxu0
        %v678 = vadd.f32 %v166, %v677
        %679 = vdwg.mxu0
        %680 = vmatprep.subr.mxu0 %v168
        %681 = vmatpush1.msra.mxu0 %v167
        %682 = vmatprep.subr.mxu0 0.0
        %683 = vmatpush1.msra.mxu0 0.0
        %684 = vmatprep.subr.mxu0 0.0
        %685 = vmatpush1.msra.mxu0 0.0
        %686 = vmatprep.subr.mxu0 0.0
        %687 = vmatpush1.msra.mxu0 0.0
        %688 = vmatprep.subr.mxu0 0.0
        %689 = vmatpush1.msra.mxu0 0.0
        %690 = vmatprep.subr.mxu0 0.0
        %691 = vmatpush1.msra.mxu0 0.0
        %692 = vmatprep.subr.mxu0 0.0
        %693 = vmatpush1.msra.mxu0 0.0
        %694 = vmatprep.subr.mxu0 0.0
        %695 = vmatpush1.msra.mxu0 0.0
        %696 = vmatprep.subr.mxu0 0.0
        %697 = vmatpush1.msra.mxu0 0.0
        %698 = vmatprep.subr.mxu0 0.0
        %699 = vmatpush1.msra.mxu0 0.0
        %700 = vmatprep.subr.mxu0 0.0
        %701 = vmatpush1.msra.mxu0 0.0
        %702 = vmatprep.subr.mxu0 0.0
        %703 = vmatpush1.msra.mxu0 0.0
        %704 = vmatprep.subr.mxu0 0.0
        %705 = vmatpush1.msra.mxu0 0.0
        %706 = vmatprep.subr.mxu0 0.0
        %707 = vmatpush1.msra.mxu0 0.0
        %708 = vmatprep.subr.mxu0 0.0
        %709 = vmatpush1.msra.mxu0 0.0
        %710 = vmatprep.subr.mxu0 0.0
        %711 = vmatpush1.msra.mxu0 0.0
        %712 = vmatprep.subr.mxu0 0.0
        %713 = vmatpush1.msra.mxu0 0.0
        %714 = vmatprep.subr.mxu0 0.0
        %715 = vmatpush1.msra.mxu0 0.0
        %716 = vmatprep.subr.mxu0 0.0
        %717 = vmatpush1.msra.mxu0 0.0
        %718 = vmatprep.subr.mxu0 0.0
        %719 = vmatpush1.msra.mxu0 0.0
        %720 = vmatprep.subr.mxu0 0.0
        %721 = vmatpush1.msra.mxu0 0.0
        %722 = vmatprep.subr.mxu0 0.0
        %723 = vmatpush1.msra.mxu0 0.0
        %724 = vmatprep.subr.mxu0 0.0
        %725 = vmatpush1.msra.mxu0 0.0
        %726 = vmatprep.subr.mxu0 0.0
        %727 = vmatpush1.msra.mxu0 0.0
        %728 = vmatprep.subr.mxu0 0.0
        %729 = vmatpush1.msra.mxu0 0.0
        %730 = vmatprep.subr.mxu0 0.0
        %731 = vmatpush1.msra.mxu0 0.0
        %732 = vmatprep.subr.mxu0 0.0
        %733 = vmatpush1.msra.mxu0 0.0
        %734 = vmatprep.subr.mxu0 0.0
        %735 = vmatpush1.msra.mxu0 0.0
        %736 = vmatprep.subr.mxu0 0.0
        %737 = vmatpush1.msra.mxu0 0.0
        %738 = vmatprep.subr.mxu0 0.0
        %739 = vmatpush1.msra.mxu0 0.0
        %740 = vmatprep.subr.mxu0 0.0
        %741 = vmatpush1.msra.mxu0 0.0
        %742 = vmatprep.subr.mxu0 0.0
        %743 = vmatpush1.msra.mxu0 0.0
        %744 = vmatprep.mubr.f32.mxu0 0.0
        %745 = vmatmul.mubr.f32.gmra.mrb[0].mxu0 %v465
        %v746 = vpop.f32.mrb[0].mxu0
        %v747 = vadd.f32 %v167, %v746
        %v748 = vpop.f32.mrb[0].mxu0
        %v749 = vadd.f32 %v168, %v748
        %750 = vdwg.mxu0
        %751 = vst [vmem:[%s160] sm:$0xff] %v534
        %752 = vst [vmem:[%s160 + $0x8] sm:$0xff] %v536
        %753 = vst [vmem:[%s160 + $0x10] sm:$0xff] %v605
        %754 = vst [vmem:[%s160 + $0x18] sm:$0xff] %v607
        %755 = vst [vmem:[%s160 + $0x20] sm:$0xff] %v676
        %756 = vst [vmem:[%s160 + $0x28] sm:$0xff] %v678
        %757 = vst [vmem:[%s160 + $0x30] sm:$0xff] %v747
        %758 = vst [vmem:[%s160 + $0x38] sm:$0xff] %v749
        %s759 = sand.u32 %s75, 1
        %s760 = scalar_lea.sflag [#allocation5], %s759
        %s761 = sand.u32 %s75, 1
        %s762 = smul.addr %s761, 64
        %s763 = scalar_lea.vmem [#allocation6], %s762
        // Predicated region
        $region33: #{tpu_custom_call.1} parent=27 // pred_check
          %p764 = pneg %p85
        $region34: #{tpu_custom_call.1} parent=27 // pred_check_branch
          %766 = sbr.rel (%p764) target = $region36
        $region35: #{tpu_custom_call.1} parent=27 // pred_region
          %s768 = ssub.s32 1024, 1024
          %769 = vsyncadd %s760, %s768
          %s770 = smul.addr %s20, 8
          %s771 = smul.addr %s770, 128
          %s772 = scalar_lea.hbm %s2, %s771
          %s774 = sshll.u32 %s763, 4
          %s775 = int_to_ptr.vmem [resolvable:$true] %s774
          %777 = dma.vmem_to_hbm [thread:$0]  %s775, 1024, %s772, %s760
        $region36: #{tpu_custom_call.1} parent=27 // pred_fallthru
          _
      $region28: #{tpu_custom_call.1} parent=5 // pred_fallthru
        _
      %p778 = scmp.le.s32.totalorder 2, %s15
      // Predicated region
      $region37: #{tpu_custom_call.1} parent=5 // pred_check
        %p779 = pneg %p778
      $region38: #{tpu_custom_call.1} parent=5 // pred_check_branch
        %781 = sbr.rel (%p779) target = $region40
      $region39: #{tpu_custom_call.1} parent=5 // pred_region
        %s782 = ssub.s32 %s15, 2
        // Predicated region
        $region41: #{tpu_custom_call.1} parent=39 // pred_check
          %p783 = pneg %p91
        $region42: #{tpu_custom_call.1} parent=39 // pred_check_branch
          %785 = sbr.rel (%p783) target = $region44
        $region43: #{tpu_custom_call.1} parent=39 // pred_region
          %s786 = sand.u32 %s76, 1
          %s787 = scalar_lea.sflag [#allocation5], %s786
          %s788 = sand.u32 %s76, 1
          %s789 = smul.addr %s788, 64
          %s790 = scalar_lea.vmem [#allocation6], %s789
          %791 = dma.done %s787, 1024
        $region44: #{tpu_custom_call.1} parent=39 // pred_fallthru
          _
      $region40: #{tpu_custom_call.1} parent=5 // pred_fallthru
        _
    $region6: #{tpu_custom_call.1} parent=1 // loop_footer
      %s19 = sadd.s32 1, %s15
    $region7: #{tpu_custom_call.1} parent=1 // loop_footer_branch
      %14 = sbr.rel target = $region3
    $region8: #{tpu_custom_call.1} parent=1 // loop_exit
      _
    %792 = vsyncpa [#allocation4], 1
    %s793 = scalar_lea.sflag [#allocation4], 1
    %794 = vsyncpa %s793, 1
    %795 = vsyncpa [#allocation5], 1
    %s796 = scalar_lea.sflag [#allocation5], 1
    %797 = vsyncpa %s796, 1

</llo_original>
